<compile_context>
chip_gen: v7x
topology: tpu7x:2x2x1
jax: 0.10.0
libtpu: 0.0.40
codegen_flags: <defaults>
</compile_context>

<pallas_src>
import functools

import jax
import jax.numpy as jnp
import numpy as np
from jax import lax
from jax.experimental import pallas as pl
from jax.experimental.pallas import tpu as pltpu


# ---------------------------------------------------------------------------
# Kernels
# ---------------------------------------------------------------------------
def _style_loss_kernel(x_ref, target_ref, g_ref, loss_ref, *,
                       weight, gram_norm, mse_norm, precision):
    """Single-core path. Grid axis 0 iterates K-tiles of the c*d contraction.

    x_ref     : (N, TK)  current K-tile of the flattened features
    target_ref: (N, N)   precomputed style target (already scaled by weight)
    g_ref     : (N, N)   output: weight-scaled Gram matrix; doubles as the f32
                         accumulator (constant block index across the K axis)
    loss_ref  : (1, 1)   SMEM output: scalar MSE loss
    """
    k = pl.program_id(0)
    x = x_ref[...]

    # 'nk,mk->nm' straight on the MXU; no x.T materialized, no XLU transpose.
    partial = lax.dot_general(
        x, x,
        dimension_numbers=(((1,), (1,)), ((), ())),
        preferred_element_type=jnp.float32,
        precision=precision,
    )

    @pl.when(k == 0)
    def _():
        g_ref[...] = partial

    @pl.when(k > 0)
    def _():
        g_ref[...] += partial

    @pl.when(k == pl.num_programs(0) - 1)
    def _():
        # G = (X X^T) / (a*b*c*d), scaled by the style weight.
        g = g_ref[...] * (weight / gram_norm)
        g_ref[...] = g
        diff = g - target_ref[...]
        loss_ref[0, 0] = jnp.sum(diff * diff) * (1.0 / mse_norm)


def _gram_partial_kernel(x_ref, g_ref, *, scale, precision):
    """Dual-core path. grid = (num_splits, k_per_split); axis 0 is "parallel"
    so each TensorCore owns one K-slice and accumulates its own (1, N, N) slab.
    The weight/gram_norm scale is applied per slab (linear, so summing the
    scaled slabs afterwards is exact)."""
    k = pl.program_id(1)
    x = x_ref[...]
    partial = lax.dot_general(
        x, x,
        dimension_numbers=(((1,), (1,)), ((), ())),
        preferred_element_type=jnp.float32,
        precision=precision,
    )

    @pl.when(k == 0)
    def _():
        g_ref[0] = partial

    @pl.when(k > 0)
    def _():
        g_ref[0] += partial

    @pl.when(k == pl.num_programs(1) - 1)
    def _():
        g_ref[0] = g_ref[0] * scale


# ---------------------------------------------------------------------------
# Tiling / budgeting helpers (generation-aware)
# ---------------------------------------------------------------------------
def _round_up(v, mult):
    return -(-v // mult) * mult


def _round_down(v, mult):
    return (v // mult) * mult


def _device_kind():
    try:
        return jax.devices()[0].device_kind.lower()
    except Exception:
        return ""


def _vmem_capacity_bytes():
    """Per-TensorCore VMEM capacity, with safe fallbacks."""
    try:
        cap = getattr(pltpu.get_tpu_info(), "vmem_capacity_bytes", None)
        if cap:
            return int(cap)
    except Exception:
        pass
    kind = _device_kind()
    if "v7" in kind or "7x" in kind:
        return 64 * 1024 * 1024
    if kind:                          # v5e / v6e / others: 128 MiB per core
        return 128 * 1024 * 1024
    return 64 * 1024 * 1024           # unknown: be conservative


def _default_num_core_splits():
    # v7x has 2 TensorCores per chip: split the K reduction between them.
    # TODO(synk): v4/v5p megacore (also 2 TCs) could be enabled the same way.
    kind = _device_kind()
    return 2 if ("v7" in kind or "7x" in kind) else 1


def _pick_tile_cols(n, m, itemsize, resident_bytes, vmem_cap):
    """Columns per X K-tile, chosen by bytes from the per-chip VMEM budget."""
    usable = (vmem_cap * 5) // 8                  # headroom for compiler scratch
    x_budget = max(usable - resident_bytes, 1 << 20)
    # X stream is double-buffered; beyond ~16-32 MiB per buffer the per-step
    # overhead is already fully amortized (diminishing returns).
    per_buf_cap = (16 << 20) if vmem_cap <= (64 << 20) else (32 << 20)
    per_buf = min(x_budget // 2, per_buf_cap)
    cols = per_buf // (n * itemsize)
    return max(_round_down(cols, 128), 128)


# ---------------------------------------------------------------------------
# Forward wrapper
# ---------------------------------------------------------------------------
def style_loss_forward(x, target, weight, *, num_core_splits=None,
                       tile_cols=None, precision=None):
    """Returns (output, G, loss) mirroring StyleLoss.forward side effects.

    x      : (a, b, c, d) float32 or bfloat16 NCHW feature map
    target : (a*b, a*b) float32, detached target Gram already multiplied by weight
    weight : python float
    """
    a, b, c, d = x.shape
    n, m = a * b, c * d
    feats = x.reshape(n, m)                       # metadata-only reshape
    itemsize = np.dtype(feats.dtype).itemsize     # bf16 accepted as-is (no upcast)

    num_splits = (int(num_core_splits) if num_core_splits is not None
                  else _default_num_core_splits())
    num_splits = max(1, num_splits)

    vmem_cap = _vmem_capacity_bytes()
    # Resident f32 blocks (target + Gram accumulator), conservatively counted
    # double-buffered.  TODO(synk): tile the (N, N) output itself for N so
    # large that N*N f32 no longer fits VMEM (not reached for VGG-scale N<=512).
    resident = 4 * n * n * 4
    cols = (max(int(tile_cols), 128) if tile_cols is not None
            else _pick_tile_cols(n, m, itemsize, resident, vmem_cap))

    if m <= cols:
        tk, m_pad, num_splits = m, m, 1           # single K step, no padding
    else:
        tk = None
        for cand in range(_round_down(min(cols, m), 128), 127, -128):
            if m % cand == 0 and (m // cand) % num_splits == 0:
                tk = cand
                break
        if tk is None:                            # rare ragged tail: pad
            tk = _round_down(min(cols, m), 128)
            m_pad = _round_up(m, tk * num_splits)
        else:
            m_pad = m
    if m_pad != m:
        # Zero columns contribute nothing to X X^T; gram_norm stays a*b*c*d.
        feats = jnp.pad(feats, ((0, 0), (0, m_pad - m)))
    num_k = m_pad // tk

    # VMEM limit from the actual buffers + headroom, capped per generation.
    x_tile_bytes = 2 * n * tk * itemsize          # double-buffered X stream
    resident_actual = (4 * n * n * 4) if num_splits == 1 else (2 * n * n * 4)
    vmem_limit = min(x_tile_bytes + resident_actual + (8 << 20),
                     vmem_cap - (16 << 20))
    vmem_limit = int(max(vmem_limit, 32 << 20))

    gram_norm = float(a * b * c * d)

    if num_splits == 1:
        kernel = functools.partial(
            _style_loss_kernel, weight=float(weight), gram_norm=gram_norm,
            mse_norm=float(n * n), precision=precision)
        g, loss = pl.pallas_call(
            kernel,
            out_shape=(
                jax.ShapeDtypeStruct((n, n), jnp.float32),
                jax.ShapeDtypeStruct((1, 1), jnp.float32),
            ),
            grid_spec=pltpu.PrefetchScalarGridSpec(
                num_scalar_prefetch=0,
                grid=(num_k,),
                in_specs=[
                    pl.BlockSpec((n, tk), lambda k: (0, k)),    # features K-tile
                    # Constant index -> VMEM-resident, no re-DMA per step.
                    pl.BlockSpec((n, n), lambda k: (0, 0)),
                ],
                out_specs=[
                    # Constant index across the reduction axis -> this block IS
                    # the f32 accumulator (no scratch, no final copy).
                    pl.BlockSpec((n, n), lambda k: (0, 0)),
                    # Scalar loss via SMEM (no lane-sparse VMEM store).
                    pl.BlockSpec(memory_space=pltpu.MemorySpace.SMEM),
                ],
            ),
            compiler_params=pltpu.CompilerParams(
                dimension_semantics=("arbitrary",),   # K is a reduction axis
                vmem_limit_bytes=vmem_limit,
            ),
        )(feats, target)
        # StyleLoss.forward returns input.clone(); jnp arrays are immutable.
        return x, g, loss[0, 0]

    # ---- dual-TensorCore path (v7x): split the K reduction across cores ----
    k_per_split = num_k // num_splits
    kernel = functools.partial(
        _gram_partial_kernel, scale=float(weight) / gram_norm,
        precision=precision)
    partials = pl.pallas_call(
        kernel,
        out_shape=jax.ShapeDtypeStruct((num_splits, n, n), jnp.float32),
        grid_spec=pltpu.PrefetchScalarGridSpec(
            num_scalar_prefetch=0,
            grid=(num_splits, k_per_split),
            in_specs=[
                pl.BlockSpec((n, tk), lambda s, k: (0, s * k_per_split + k)),
            ],
            out_specs=pl.BlockSpec((1, n, n), lambda s, k: (s, 0, 0)),
        ),
        compiler_params=pltpu.CompilerParams(
            dimension_semantics=("parallel", "arbitrary"),
            vmem_limit_bytes=vmem_limit,
        ),
    )(feats)
    # O(N^2) combine + MSE in plain JAX: keeps the target block and the
    # cross-lane reduce out of the kernel's VMEM budget / critical last step.
    g = jnp.sum(partials, axis=0)
    loss = jnp.mean((g - target) ** 2)
    # TODO(synk): StyleLoss.backward()/autograd retention is not implemented
    # here (forward-only kernel).
    return x, g, loss


# ---------------------------------------------------------------------------
# Reference + tests
# ---------------------------------------------------------------------------
def _reference(x, target, weight, precision=None):
    a, b, c, d = x.shape
    feats = x.reshape(a * b, c * d).astype(jnp.float32)
    g = jnp.dot(feats, feats.T, precision=precision) / (a * b * c * d)
    g = g * weight
    loss = jnp.mean((g - target) ** 2)
    return g, loss


def _make_case(key, shape, weight, dtype=jnp.float32):
    k_in, k_style = jax.random.split(key)
    x = jax.random.normal(k_in, shape, dtype=jnp.float32).astype(dtype)
    style = jax.random.normal(k_style, shape, dtype=jnp.float32).astype(dtype)
    a, b, c, d = shape
    sf = style.reshape(a * b, c * d).astype(jnp.float32)
    target = (sf @ sf.T / (a * b * c * d)) * weight   # detach(gram(style)) * w
    return x, target


def _check(x, target, weight, g, loss, *, rtol, atol):
    ref_g, ref_loss = _reference(x, target, weight)
    np.testing.assert_allclose(np.asarray(g), np.asarray(ref_g),
                               rtol=rtol, atol=atol)
    np.testing.assert_allclose(np.asarray(loss), np.asarray(ref_loss),
                               rtol=max(rtol, 1e-4), atol=atol)


if __name__ == "__main__":
    key = jax.random.PRNGKey(0)
    keys = jax.random.split(key, 5)

    # 1) Conv-like feature map: N=8, M=256 -> single K step, single-core path.
    w = 1000.0
    x, t = _make_case(keys[0], (2, 4, 16, 16), w)
    out, g, loss = jax.block_until_ready(style_loss_forward(x, t, w))
    assert out.shape == x.shape and out.dtype == x.dtype
    _check(x, t, w, g, loss, rtol=2e-5, atol=1e-4)

    # 2) M = 14*14 = 196 (not a multiple of 128): full-width tile, NO padding.
    x, t = _make_case(keys[1], (2, 4, 14, 14), w)
    out, g, loss = jax.block_until_ready(style_loss_forward(x, t, w))
    _check(x, t, w, g, loss, rtol=2e-5, atol=1e-4)

    # 3) Forced dual-TensorCore split path (runs serially on 1-TC chips):
    #    N=32, M=1024 -> 4 K-tiles of 256 split across 2 "cores".
    w3 = 500.0
    x, t = _make_case(keys[2], (1, 32, 32, 32), w3)
    out, g, loss = jax.block_until_ready(
        style_loss_forward(x, t, w3, num_core_splits=2, tile_cols=256))
    _check(x, t, w3, g, loss, rtol=2e-5, atol=1e-4)

    # 4) bf16 feature map accepted without an upcast pass (f32 accumulation).
    x, t = _make_case(keys[3], (2, 4, 16, 16), w, dtype=jnp.bfloat16)
    out, g, loss = jax.block_until_ready(style_loss_forward(x, t, w))
    _check(x, t, w, g, loss, rtol=2e-2, atol=0.5)

    # 5) Ragged M larger than the tile -> exercises the zero-pad fallback.
    w5 = 10.0
    x, t = _make_case(keys[4], (1, 8, 20, 15), w5)
    out, g, loss = jax.block_until_ready(
        style_loss_forward(x, t, w5, tile_cols=128))
    _check(x, t, w5, g, loss, rtol=2e-5, atol=1e-4)

    print("KERNEL_OK")
</pallas_src>

<mosaic_0001>
module attributes {stable_mosaic.version = 11 : i64} {
  func.func @_style_loss_kernel(%arg0: i32, %arg1: memref<8x256xf32, #tpu.memory_space<vmem>>, %arg2: memref<8x8xf32, #tpu.memory_space<vmem>>, %arg3: memref<8x8xf32, #tpu.memory_space<vmem>>, %arg4: memref<1x1xf32, #tpu.memory_space<smem>>) attributes {dimension_semantics = [#tpu.dimension_semantics<arbitrary>], iteration_bounds = array<i64: 1>, scalar_prefetch = 0 : i64, scratch_operands = 0 : i64, tpu.core_type = #tpu.core_type<tc>, window_params = [{transform_indices = @transform_0, window_bounds = array<i64: 8, 256>}, {pipeline_mode = #tpu.pipeline_mode<synchronous>, transform_indices = @transform_1, window_bounds = array<i64: 8, 8>}, {pipeline_mode = #tpu.pipeline_mode<synchronous>, transform_indices = @transform_2, window_bounds = array<i64: 8, 8>}, {transform_indices = @transform_3, window_bounds = array<i64: 1, 1>}]} {
    %c0 = arith.constant 0 : index
    %c0_0 = arith.constant 0 : index
    %0 = vector.load %arg1[%c0, %c0_0] : memref<8x256xf32, #tpu.memory_space<vmem>>, vector<8x256xf32>
    %cst = arith.constant dense<0.000000e+00> : vector<8x8xf32>
    %1 = tpu.matmul %0, %0, %cst {dimension_numbers = #tpu.dot_dimension_numbers<[1], [1], [0], [0], [0, 0, 1, 0], [], []>} : vector<8x256xf32>, vector<8x256xf32>, vector<8x8xf32> -> vector<8x8xf32>
    %c0_i32 = arith.constant 0 : i32
    %2 = arith.cmpi eq, %arg0, %c0_i32 : i32
    %3 = arith.extui %2 : i1 to i32
    %c0_i32_1 = arith.constant 0 : i32
    %4 = arith.cmpi ne, %3, %c0_i32_1 : i32
    scf.if %4 {
      %c0_6 = arith.constant 0 : index
      %c0_7 = arith.constant 0 : index
      %11 = vector.load %arg3[%c0_6, %c0_7] : memref<8x8xf32, #tpu.memory_space<vmem>>, vector<8x8xf32>
      tpu.vector_store %arg3[%c0_6, %c0_7], %1 {strides = array<i32>} : memref<8x8xf32, #tpu.memory_space<vmem>>, vector<8x8xf32>,
    } else {
    }
    %c0_i32_2 = arith.constant 0 : i32
    %5 = arith.cmpi sgt, %arg0, %c0_i32_2 : i32
    %6 = arith.extui %5 : i1 to i32
    %c0_i32_3 = arith.constant 0 : i32
    %7 = arith.cmpi ne, %6, %c0_i32_3 : i32
    scf.if %7 {
      %c0_6 = arith.constant 0 : index
      %c0_7 = arith.constant 0 : index
      %11 = vector.load %arg3[%c0_6, %c0_7] : memref<8x8xf32, #tpu.memory_space<vmem>>, vector<8x8xf32>
      %12 = arith.addf %11, %1 : vector<8x8xf32>
      %c0_8 = arith.constant 0 : index
      %c0_9 = arith.constant 0 : index
      %13 = vector.load %arg3[%c0_8, %c0_9] : memref<8x8xf32, #tpu.memory_space<vmem>>, vector<8x8xf32>
      tpu.vector_store %arg3[%c0_8, %c0_9], %12 {strides = array<i32>} : memref<8x8xf32, #tpu.memory_space<vmem>>, vector<8x8xf32>,
    } else {
    }
    %c0_i32_4 = arith.constant 0 : i32
    %8 = arith.cmpi eq, %arg0, %c0_i32_4 : i32
    %9 = arith.extui %8 : i1 to i32
    %c0_i32_5 = arith.constant 0 : i32
    %10 = arith.cmpi ne, %9, %c0_i32_5 : i32
    scf.if %10 {
      %c0_6 = arith.constant 0 : index
      %c0_7 = arith.constant 0 : index
      %11 = vector.load %arg3[%c0_6, %c0_7] : memref<8x8xf32, #tpu.memory_space<vmem>>, vector<8x8xf32>
      %cst_8 = arith.constant 0.48828125 : f32
      %12 = vector.broadcast %cst_8 : f32 to vector<8x8xf32>
      %13 = arith.mulf %11, %12 : vector<8x8xf32>
      %c0_9 = arith.constant 0 : index
      %c0_10 = arith.constant 0 : index
      %14 = vector.load %arg3[%c0_9, %c0_10] : memref<8x8xf32, #tpu.memory_space<vmem>>, vector<8x8xf32>
      tpu.vector_store %arg3[%c0_9, %c0_10], %13 {strides = array<i32>} : memref<8x8xf32, #tpu.memory_space<vmem>>, vector<8x8xf32>,
      %c0_11 = arith.constant 0 : index
      %c0_12 = arith.constant 0 : index
      %15 = vector.load %arg2[%c0_11, %c0_12] : memref<8x8xf32, #tpu.memory_space<vmem>>, vector<8x8xf32>
      %16 = arith.subf %13, %15 : vector<8x8xf32>
      %17 = arith.mulf %16, %16 : vector<8x8xf32>
      %18 = vector.shape_cast %17 : vector<8x8xf32> to vector<1x8x8xf32>
      %cst_13 = arith.constant dense<0.000000e+00> : vector<1xf32>
      %19 = vector.multi_reduction <add>, %18, %cst_13 [1, 2] : vector<1x8x8xf32> to vector<1xf32>
      %20 = vector.shape_cast %19 : vector<1xf32> to vector<1x1x1xf32>
      %21 = vector.extract %20[0, 0, 0] : f32 from vector<1x1x1xf32>
      %cst_14 = arith.constant 1.562500e-02 : f32
      %22 = arith.mulf %21, %cst_14 : f32
      %c0_15 = arith.constant 0 : index
      %c0_16 = arith.constant 0 : index
      %23 = memref.load %arg4[%c0_15, %c0_16] : memref<1x1xf32, #tpu.memory_space<smem>>
      memref.store %22, %arg4[%c0_15, %c0_16] : memref<1x1xf32, #tpu.memory_space<smem>>
    } else {
    }
    return
  }
  func.func @transform_0(%arg0: i32) -> (i32, i32) {
    %c0_i32 = arith.constant 0 : i32
    %c0_i32_0 = arith.constant 0 : i32
    return %c0_i32, %arg0 : i32, i32
  }
  func.func @transform_1(%arg0: i32) -> (i32, i32) {
    %c0_i32 = arith.constant 0 : i32
    %c0_i32_0 = arith.constant 0 : i32
    %c0_i32_1 = arith.constant 0 : i32
    return %c0_i32, %c0_i32_0 : i32, i32
  }
  func.func @transform_2(%arg0: i32) -> (i32, i32) {
    %c0_i32 = arith.constant 0 : i32
    %c0_i32_0 = arith.constant 0 : i32
    %c0_i32_1 = arith.constant 0 : i32
    return %c0_i32, %c0_i32_0 : i32, i32
  }
  func.func @transform_3(%arg0: i32) -> (i32, i32) {
    %c0_i32 = arith.constant 0 : i32
    %c0_i32_0 = arith.constant 0 : i32
    %c0_i32_1 = arith.constant 0 : i32
    return %c0_i32, %c0_i32_0 : i32, i32
  }
}

</mosaic_0001>

<llo_original>
// kernel: tpu_custom_call.1
$region0: #{tpu_custom_call.1}
  #allocation0 [shape = 'u32[]', space=smem, size = 0x4, offset = 0x4, fixed_abs, tag = 'smem constant byte address 0x4 - core index']
  #allocation1 [shape = 'u32[144,128]{1,0:T(1,128)}', space=vmem, size = 0x12000, scoped, tag = 'internal scratch']
  %s0 = inlined_call_operand.hbm [shape: f32[8,256], index: 0, kind: input, shape index: {}]
  %s1 = inlined_call_operand.hbm [shape: f32[8,8], index: 1, kind: input, shape index: {}]
  %s2 = inlined_call_operand.hbm [shape: f32[8,8], index: 2, kind: output, shape index: {0}]
  %s3 = inlined_call_operand.hbm [shape: f32[1,1], index: 3, kind: output, shape index: {1}]
  %4 = xla_tuple %s2, %s3
  %s5 = sld [smem:[#allocation0]]
  $region46: #{tpu_custom_call.1} parent=0
    _
  %s7 = ssub.s32 1, %s5
  %s8 = scalar_select 0, %s7, %s5
  $region1: #{tpu_custom_call.1} parent=0
    #allocation2 [shape = 'u8[8192]{0}', space=vmem, size = 0x2000, scoped, tag = 'input window, operand 0, single buffered']
    #allocation3 [shape = 's32[1]{0}', space=sflag, size = 0x4, scoped, tag = 'scoped memory for tpu_custom_call.1']
    #allocation4 [shape = 's32[1]{0}', space=sflag, size = 0x4, scoped, tag = 'scoped memory for tpu_custom_call.1']
    #allocation5 [shape = 's32[1]{0}', space=sflag, size = 0x4, scoped, tag = 'scoped memory for tpu_custom_call.1']
    #allocation6 [shape = 'u8[4096]{0}', space=vmem, size = 0x1000, scoped, tag = 'input window, operand 1, single buffered']
    #allocation7 [shape = 's32[1]{0}', space=sflag, size = 0x4, scoped, tag = 'scoped memory for tpu_custom_call.1']
    #allocation8 [shape = 'u8[4096]{0}', space=vmem, size = 0x1000, scoped, tag = 'output window, operand 0, single buffered']
    #allocation9 [shape = 'u8[512]{0}', space=smem, size = 0x200, scoped, tag = 'output window, operand 1, single buffered']
    %9 = vsyncpa [#allocation3], 0
    %10 = vsyncpa [#allocation7], 0
    %11 = vsyncpa [#allocation4], 0
    %12 = vsyncpa [#allocation5], 0
    // Predicated region
    $region2: #{tpu_custom_call.1} parent=1 // pred_check
      _
    $region3: #{tpu_custom_call.1} parent=1 // pred_check_branch
      %14 = sbr.rel (0) target = $region5
    $region4: #{tpu_custom_call.1} parent=1 // pred_region
      %s16 = ssub.s32 256, 256
      %17 = vsyncadd [#allocation3], %s16
      %s19 = sshll.u32 [#allocation2], 4
      %s20 = int_to_ptr.vmem [resolvable:$true] %s19
      %22 = dma.hbm_to_vmem [thread:$0]  %s0, 256, %s20, [#allocation3]
    $region5: #{tpu_custom_call.1} parent=1 // pred_fallthru
      _
    // Predicated region
    $region6: #{tpu_custom_call.1} parent=1 // pred_check
      _
    $region7: #{tpu_custom_call.1} parent=1 // pred_check_branch
      %24 = sbr.rel (0) target = $region9
    $region8: #{tpu_custom_call.1} parent=1 // pred_region
      %s26 = ssub.s32 128, 128
      %27 = vsyncadd [#allocation7], %s26
      %s29 = sshll.u32 [#allocation6], 4
      %s30 = int_to_ptr.vmem [resolvable:$true] %s29
      %32 = dma.hbm_to_vmem [thread:$0]  %s1, 128, %s30, [#allocation7]
    $region9: #{tpu_custom_call.1} parent=1 // pred_fallthru
      _
    // Predicated region
    $region10: #{tpu_custom_call.1} parent=1 // pred_check
      _
    $region11: #{tpu_custom_call.1} parent=1 // pred_check_branch
      %34 = sbr.rel (0) target = $region13
    $region12: #{tpu_custom_call.1} parent=1 // pred_region
      %35 = dma.done [#allocation3], 256
    $region13: #{tpu_custom_call.1} parent=1 // pred_fallthru
      _
    // Predicated region
    $region14: #{tpu_custom_call.1} parent=1 // pred_check
      _
    $region15: #{tpu_custom_call.1} parent=1 // pred_check_branch
      %37 = sbr.rel (0) target = $region17
    $region16: #{tpu_custom_call.1} parent=1 // pred_region
      %38 = dma.done [#allocation7], 128
    $region17: #{tpu_custom_call.1} parent=1 // pred_fallthru
      _
    %v39 = vld [vmem:[#allocation2] sm:$0xff]
    %v40 = vld [vmem:[#allocation2 + $0x8] sm:$0xff]
    %41 = vmatprep.subr.mxu0 %v40
    %42 = vmatpush1.xpose.msra.mxu0 %v39
    %43 = vmatprep.subr.mxu0 0.0
    %44 = vmatpush1.xpose.msra.mxu0 0.0
    %45 = vmatprep.subr.mxu0 0.0
    %46 = vmatpush1.xpose.msra.mxu0 0.0
    %47 = vmatprep.subr.mxu0 0.0
    %48 = vmatpush1.xpose.msra.mxu0 0.0
    %49 = vmatprep.subr.mxu0 0.0
    %50 = vmatpush1.xpose.msra.mxu0 0.0
    %51 = vmatprep.subr.mxu0 0.0
    %52 = vmatpush1.xpose.msra.mxu0 0.0
    %53 = vmatprep.subr.mxu0 0.0
    %54 = vmatpush1.xpose.msra.mxu0 0.0
    %55 = vmatprep.subr.mxu0 0.0
    %56 = vmatpush1.xpose.msra.mxu0 0.0
    %57 = vmatprep.subr.mxu0 0.0
    %58 = vmatpush1.xpose.msra.mxu0 0.0
    %59 = vmatprep.subr.mxu0 0.0
    %60 = vmatpush1.xpose.msra.mxu0 0.0
    %61 = vmatprep.subr.mxu0 0.0
    %62 = vmatpush1.xpose.msra.mxu0 0.0
    %63 = vmatprep.subr.mxu0 0.0
    %64 = vmatpush1.xpose.msra.mxu0 0.0
    %65 = vmatprep.subr.mxu0 0.0
    %66 = vmatpush1.xpose.msra.mxu0 0.0
    %67 = vmatprep.subr.mxu0 0.0
    %68 = vmatpush1.xpose.msra.mxu0 0.0
    %69 = vmatprep.subr.mxu0 0.0
    %70 = vmatpush1.xpose.msra.mxu0 0.0
    %71 = vmatprep.subr.mxu0 0.0
    %72 = vmatpush1.xpose.msra.mxu0 0.0
    %73 = vmatprep.subr.mxu0 0.0
    %74 = vmatpush1.xpose.msra.mxu0 0.0
    %75 = vmatprep.subr.mxu0 0.0
    %76 = vmatpush1.xpose.msra.mxu0 0.0
    %77 = vmatprep.subr.mxu0 0.0
    %78 = vmatpush1.xpose.msra.mxu0 0.0
    %79 = vmatprep.subr.mxu0 0.0
    %80 = vmatpush1.xpose.msra.mxu0 0.0
    %81 = vmatprep.subr.mxu0 0.0
    %82 = vmatpush1.xpose.msra.mxu0 0.0
    %83 = vmatprep.subr.mxu0 0.0
    %84 = vmatpush1.xpose.msra.mxu0 0.0
    %85 = vmatprep.subr.mxu0 0.0
    %86 = vmatpush1.xpose.msra.mxu0 0.0
    %87 = vmatprep.subr.mxu0 0.0
    %88 = vmatpush1.xpose.msra.mxu0 0.0
    %89 = vmatprep.subr.mxu0 0.0
    %90 = vmatpush1.xpose.msra.mxu0 0.0
    %91 = vmatprep.subr.mxu0 0.0
    %92 = vmatpush1.xpose.msra.mxu0 0.0
    %93 = vmatprep.subr.mxu0 0.0
    %94 = vmatpush1.xpose.msra.mxu0 0.0
    %95 = vmatprep.subr.mxu0 0.0
    %96 = vmatpush1.xpose.msra.mxu0 0.0
    %97 = vmatprep.subr.mxu0 0.0
    %98 = vmatpush1.xpose.msra.mxu0 0.0
    %99 = vmatprep.subr.mxu0 0.0
    %100 = vmatpush1.xpose.msra.mxu0 0.0
    %101 = vmatprep.subr.mxu0 0.0
    %102 = vmatpush1.xpose.msra.mxu0 0.0
    %103 = vmatprep.subr.mxu0 0.0
    %104 = vmatpush1.xpose.msra.mxu0 0.0
    %105 = vmatprep.mubr.f32.mxu0 %v40
    %106 = vmatmul.mubr.f32.gmra.mrb[0].mxu0 %v39
    %v107 = vpop.f32.mrb[0].mxu0
    %v108 = vadd.f32 0.0, %v107
    %v109 = vpop.f32.mrb[0].mxu0
    %110 = vdwg.mxu0
    %p111 = scmp.eq.s32.totalorder 0, 0
    // Predicated region
    $region18: #{tpu_custom_call.1} parent=1 // pred_check
      %p112 = pneg %p111
    $region19: #{tpu_custom_call.1} parent=1 // pred_check_branch
      %114 = sbr.rel (%p112) target = $region21
    $region20: #{tpu_custom_call.1} parent=1 // pred_region
      %vm115 = vcmask 64512
      %116 = vst.msk [vmem:[#allocation8] sm:$0xff] %vm115, %v108
    $region21: #{tpu_custom_call.1} parent=1 // pred_fallthru
      _
    %p117 = scmp.gt.s32.totalorder 0, 0
    // Predicated region
    $region22: #{tpu_custom_call.1} parent=1 // pred_check
      %p118 = pneg %p117
    $region23: #{tpu_custom_call.1} parent=1 // pred_check_branch
      %120 = sbr.rel (%p118) target = $region25
    $region24: #{tpu_custom_call.1} parent=1 // pred_region
      %v121 = vld [vmem:[#allocation8] sm:$0xff]
      %v122 = vadd.f32 %v121, %v108
      %vm123 = vcmask 64512
      %124 = vst.msk [vmem:[#allocation8] sm:$0xff] %vm123, %v122
    $region25: #{tpu_custom_call.1} parent=1 // pred_fallthru
      _
    // Predicated region
    $region26: #{tpu_custom_call.1} parent=1 // pred_check
      %p125 = pneg %p111
    $region27: #{tpu_custom_call.1} parent=1 // pred_check_branch
      %127 = sbr.rel (%p125) target = $region29
    $region28: #{tpu_custom_call.1} parent=1 // pred_region
      %v128 = vld [vmem:[#allocation8] sm:$0xff]
      %v129 = vmul.f32 %v128, 0.48828125
      %vm130 = vcmask 64512
      %131 = vst.msk [vmem:[#allocation8] sm:$0xff] %vm130, %v129
      %v132 = vld [vmem:[#allocation6] sm:$0xff]
      %v133 = vsub.f32 %v129, %v132
      %v134 = vmul.f32 %v133, %v133
      %v135 = vsel %vm130, %v134, 0.0
      %136 = vadd.xlane.f32.xlu0 %v135
      %v137 = vpop.xlane.xlu0 %136
      %v138 = vrot.slane %v137, 4
      %v139 = vadd.f32 %v137, %v138
      %v140 = vrot.slane %v139, 2
      %v141 = vadd.f32 %v139, %v140
      %v142 = vrot.slane %v141, 1
      %v143 = vadd.f32 %v141, %v142
      %s144 = vtos %v143
      %s145 = smul.f32 %s144, 0.015625
      %s146 = scalar_lea.smem [#allocation9], 0
      %147 = sst [smem:[%s146]] %s145
    $region29: #{tpu_custom_call.1} parent=1 // pred_fallthru
      _
    // Predicated region
    $region30: #{tpu_custom_call.1} parent=1 // pred_check
      _
    $region31: #{tpu_custom_call.1} parent=1 // pred_check_branch
      %149 = sbr.rel (0) target = $region33
    $region32: #{tpu_custom_call.1} parent=1 // pred_region
      %s151 = ssub.s32 128, 128
      %152 = vsyncadd [#allocation4], %s151
      %s154 = sshll.u32 [#allocation8], 4
      %s155 = int_to_ptr.vmem [resolvable:$true] %s154
      %157 = dma.vmem_to_hbm [thread:$0]  %s155, 128, %s2, [#allocation4]
    $region33: #{tpu_custom_call.1} parent=1 // pred_fallthru
      _
    // Predicated region
    $region34: #{tpu_custom_call.1} parent=1 // pred_check
      _
    $region35: #{tpu_custom_call.1} parent=1 // pred_check_branch
      %159 = sbr.rel (0) target = $region37
    $region36: #{tpu_custom_call.1} parent=1 // pred_region
      %s161 = ssub.s32 16, 16
      %162 = vsyncadd [#allocation5], %s161
      %165 = dma.smem_to_hbm [#allocation9], 16, %s3, [#allocation5]
    $region37: #{tpu_custom_call.1} parent=1 // pred_fallthru
      _
    // Predicated region
    $region38: #{tpu_custom_call.1} parent=1 // pred_check
      _
    $region39: #{tpu_custom_call.1} parent=1 // pred_check_branch
      %167 = sbr.rel (0) target = $region41
    $region40: #{tpu_custom_call.1} parent=1 // pred_region
      %168 = dma.done [#allocation4], 128
    $region41: #{tpu_custom_call.1} parent=1 // pred_fallthru
      _
    // Predicated region
    $region42: #{tpu_custom_call.1} parent=1 // pred_check
      _
    $region43: #{tpu_custom_call.1} parent=1 // pred_check_branch
      %170 = sbr.rel (0) target = $region45
    $region44: #{tpu_custom_call.1} parent=1 // pred_region
      %171 = dma.done [#allocation5], 16
    $region45: #{tpu_custom_call.1} parent=1 // pred_fallthru
      _
    %172 = sfence
    %173 = vsyncpa [#allocation3], 1
    %174 = vsyncpa [#allocation7], 1
    %175 = vsyncpa [#allocation4], 1
    %176 = vsyncpa [#allocation5], 1

</llo_original>
